<compile_context>
chip_gen: v5e
topology: v5e:2x2
jax: 0.10.0
libtpu: 0.0.40
codegen_flags: <defaults>
</compile_context>

<pallas_src>
import functools

import jax
import jax.numpy as jnp
from jax import lax
from jax.experimental import pallas as pl
from jax.experimental.pallas import tpu as pltpu

CHANNELS = 64
LAYERS = 24
NODE_TYPES = 19
BN_EPS = 1e-5
LANES = 128  # node count is padded to a multiple of the vreg lane width


def gnn_kernel(inv_n_ref, a_cat_ref, x0_ref, w_ref, b_ref, x_out_ref, *,
               n_pad, matmul_dtype):
    """Full 24-layer BiConv stack, resident in VMEM.

    inv_n : (1,)          f32 (SMEM)    1 / (real node count)
    a_cat : (2Np, Np)     matmul_dtype  [A_fwd ; A_bwd] normalized adjacencies
    x0    : (Np, C)       f32           embedded node features (zero padded)
    w     : (L, 2C, 2C)   f32           block-diag(W_out, W_back), BN affine folded
    b     : (L, 1, 2C)    f32           packed bias, BN affine folded
    x_out : (Np, C)       f32           final node features
    """
    inv_n = inv_n_ref[0]

    def layer(l, x):
        xb = x.astype(matmul_dtype)
        # scatter_mean for both edge directions as ONE adjacency matmul:
        #   rows [0, Np)   of a_cat : fwd ("out")  path (mean over in-edges)
        #   rows [Np, 2Np) of a_cat : bwd ("back") path (mean over out-edges)
        h_cat = jnp.dot(a_cat_ref[...], xb, preferred_element_type=jnp.float32)
        h_f = h_cat[:n_pad]
        h_b = h_cat[n_pad:]

        # BatchNorm1d training-mode batch statistics over the real node axis.
        # Padded rows of h are exactly zero, so full-column sums == sums over
        # real rows; divide by the real node count via inv_n.
        hh = h_cat * h_cat
        mu_f = jnp.sum(h_f, axis=0, keepdims=True) * inv_n
        mu_b = jnp.sum(h_b, axis=0, keepdims=True) * inv_n
        ex2_f = jnp.sum(hh[:n_pad], axis=0, keepdims=True) * inv_n
        ex2_b = jnp.sum(hh[n_pad:], axis=0, keepdims=True) * inv_n
        var_f = jnp.maximum(ex2_f - mu_f * mu_f, 0.0)  # clamp f32 cancellation
        var_b = jnp.maximum(ex2_b - mu_b * mu_b, 0.0)
        inv_std_f = lax.rsqrt(var_f + BN_EPS)
        inv_std_b = lax.rsqrt(var_b + BN_EPS)

        # Fold the data-dependent BN scale/shift into the tiny (2C,2C) weight
        # (O(C^2)) instead of normalizing the (Np,2C) activation slab (O(Np*C)).
        inv_std_col = jnp.concatenate(
            [inv_std_f.reshape(CHANNELS, 1), inv_std_b.reshape(CHANNELS, 1)],
            axis=0)                                     # (2C, 1)
        mu_col = jnp.concatenate(
            [mu_f.reshape(CHANNELS, 1), mu_b.reshape(CHANNELS, 1)], axis=0)
        w_l = w_ref[l]                                  # (2C, 2C) f32, block-diag
        w_scaled = inv_std_col * w_l                    # diag(inv_std) @ W
        b_new = b_ref[l] - jnp.sum(mu_col * w_scaled, axis=0, keepdims=True)
        w_mm = w_scaled.astype(matmul_dtype)

        # Linear split over K against the block-diag(W_out, W_back) weight:
        # no lane-packed (Np,2C) activation is materialized or stored.
        z = (jnp.dot(h_f.astype(matmul_dtype), w_mm[:CHANNELS, :],
                     preferred_element_type=jnp.float32)
             + jnp.dot(h_b.astype(matmul_dtype), w_mm[CHANNELS:, :],
                       preferred_element_type=jnp.float32)
             + b_new)
        z = jnp.maximum(z, 0.0)                         # ReLU, both paths at once

        # Residual + BiConv sum: out-path lanes [0,C) + back-path lanes [C,2C).
        # (Padded rows of x pick up relu(b'); they never feed real nodes since
        #  their adjacency columns are zero and `rules` indexes real nodes.)
        return x + (z[:, :CHANNELS] + z[:, CHANNELS:])

    x_out_ref[...] = lax.fori_loop(0, LAYERS, layer, x0_ref[...])


def _round_up(n, m):
    return (n + m - 1) // m * m


def build_adjacency(sources, targets, size):
    """A_fwd[t, s] = #edges(s->t) / in_deg(t);  A_bwd likewise on reversed edges."""
    counts = jnp.zeros((size, size), jnp.float32).at[targets, sources].add(1.0)
    deg_in = counts.sum(axis=1, keepdims=True)
    a_fwd = counts / jnp.maximum(deg_in, 1.0)
    counts_t = counts.T
    deg_out = counts_t.sum(axis=1, keepdims=True)
    a_bwd = counts_t / jnp.maximum(deg_out, 1.0)
    return a_fwd, a_bwd


def init_params(key):
    """Matches the torch module's initialization (BN affine = identity)."""
    k_emb, k_w, k_b, k_out = jax.random.split(key, 4)
    emb = jax.random.normal(k_emb, (NODE_TYPES, CHANNELS), jnp.float32)
    # xavier_normal_ std for (64, 64): sqrt(2 / (64 + 64)) = 0.125
    w = 0.125 * jax.random.normal(k_w, (2 * LAYERS, CHANNELS, CHANNELS), jnp.float32)
    b = jax.random.uniform(k_b, (2 * LAYERS, CHANNELS), jnp.float32, -0.125, 0.125)
    gamma = jnp.ones((2 * LAYERS, CHANNELS), jnp.float32)
    beta = jnp.zeros((2 * LAYERS, CHANNELS), jnp.float32)
    wf = jax.random.uniform(k_out, (CHANNELS, 1), jnp.float32, -0.125, 0.125)
    return emb, w, b, gamma, beta, wf


def _fold_and_pack(w, b, gamma, beta):
    """Fold the BN affine into the linear, then block-diag pack (out|back) per layer."""
    w_fold = gamma[:, :, None] * w                           # (2L, C, C)
    b_fold = jnp.einsum("lc,lco->lo", beta, w) + b           # (2L, C)
    w_out, w_back = w_fold[0::2], w_fold[1::2]               # (L, C, C) each
    b_out, b_back = b_fold[0::2], b_fold[1::2]               # (L, C) each
    zeros = jnp.zeros((LAYERS, CHANNELS, CHANNELS), jnp.float32)
    top = jnp.concatenate([w_out, zeros], axis=2)            # (L, C, 2C)
    bot = jnp.concatenate([zeros, w_back], axis=2)           # (L, C, 2C)
    w_packed = jnp.concatenate([top, bot], axis=1)           # (L, 2C, 2C) f32
    b_packed = jnp.concatenate([b_out, b_back], axis=1)[:, None, :]  # (L, 1, 2C)
    return w_packed, b_packed


def _vmem_limit_bytes(n_pad, matmul_dtype):
    """Derive the VMEM budget per chip generation instead of hard-coding it."""
    mm = jnp.dtype(matmul_dtype).itemsize
    need = (2 * n_pad * n_pad * mm                    # A_cat (fwd|bwd stacked)
            + LAYERS * (2 * CHANNELS) ** 2 * 4        # packed BN-folded weights
            + LAYERS * 2 * CHANNELS * 4               # packed biases
            + 10 * n_pad * 2 * CHANNELS * 4)          # x / h / z working set
    try:
        cap = int(getattr(pltpu.get_tpu_info(), "vmem_capacity_bytes", 64 << 20))
    except Exception:
        cap = 64 << 20                                # conservative (v7x) fallback
    return int(min(max(2 * need, 32 << 20), cap - (8 << 20)))


def model_forward(nodes, sources, targets, rules, params,
                  matmul_dtype=jnp.bfloat16):
    emb, w, b, gamma, beta, wf = params
    n_real = nodes.shape[0]
    n_pad = max(LANES, _round_up(n_real, LANES))

    x0 = jnp.zeros((n_pad, CHANNELS), jnp.float32).at[:n_real].set(emb[nodes])
    a_fwd, a_bwd = build_adjacency(sources, targets, n_pad)
    a_cat = jnp.concatenate([a_fwd, a_bwd], axis=0).astype(matmul_dtype)
    w_packed, b_packed = _fold_and_pack(w, b, gamma, beta)
    # SMEM scalar: the kernel does not bake the real node count into its code.
    inv_n = jnp.full((1,), 1.0 / n_real, jnp.float32)

    vmem = pl.BlockSpec(memory_space=pltpu.MemorySpace.VMEM)
    smem = pl.BlockSpec(memory_space=pltpu.MemorySpace.SMEM)
    kernel = functools.partial(gnn_kernel, n_pad=n_pad, matmul_dtype=matmul_dtype)

    x_final = pl.pallas_call(
        kernel,
        out_shape=jax.ShapeDtypeStruct((n_pad, CHANNELS), jnp.float32),
        in_specs=[smem, vmem, vmem, vmem, vmem],
        out_specs=vmem,
        compiler_params=pltpu.CompilerParams(
            vmem_limit_bytes=_vmem_limit_bytes(n_pad, matmul_dtype)),
    )(inv_n, a_cat, x0, w_packed, b_packed)

    # Rules gather + 64->1 output projection (lane-sparse) stay outside the kernel.
    return jnp.squeeze(x_final[rules] @ wf)


def model_forward_ref(nodes, sources, targets, rules, params):
    """Pure-JAX float32 reference implementing the torch forward directly."""
    emb, w, b, gamma, beta, wf = params
    n = nodes.shape[0]
    x = emb[nodes]
    a_fwd, a_bwd = build_adjacency(sources, targets, n)

    def conv(a, x, li):
        h = a @ x                                            # scatter_mean
        mu = h.mean(axis=0, keepdims=True)
        var = jnp.square(h - mu).mean(axis=0, keepdims=True)
        hn = (h - mu) * lax.rsqrt(var + BN_EPS) * gamma[li] + beta[li]
        return jnp.maximum(hn @ w[li] + b[li], 0.0)

    for l in range(LAYERS):
        x = x + (conv(a_fwd, x, 2 * l) + conv(a_bwd, x, 2 * l + 1))
    return jnp.squeeze(x[rules] @ wf)


if __name__ == "__main__":
    key = jax.random.PRNGKey(0)
    k_params, k_nodes, k_src, k_tgt, k_rules = jax.random.split(key, 5)

    N_NODES, N_EDGES, N_RULES = 32, 64, 8
    params = init_params(k_params)

    nodes = jax.random.randint(k_nodes, (N_NODES,), 0, NODE_TYPES, jnp.int32)
    sources = jax.random.randint(k_src, (N_EDGES,), 0, N_NODES, jnp.int32)
    targets = jax.random.randint(k_tgt, (N_EDGES,), 0, N_NODES, jnp.int32)
    rules = jax.random.randint(k_rules, (N_RULES,), 0, N_NODES, jnp.int32)

    fwd = jax.jit(model_forward, static_argnames=("matmul_dtype",))

    # Performance configuration: bf16 MXU matmuls, f32 accumulation.
    out = jax.block_until_ready(
        fwd(nodes, sources, targets, rules, params, matmul_dtype=jnp.bfloat16))
    # Validation configuration: identical kernel structure, f32 matmuls.
    out_f32 = jax.block_until_ready(
        fwd(nodes, sources, targets, rules, params, matmul_dtype=jnp.float32))

    ref = jax.block_until_ready(
        jax.jit(model_forward_ref)(nodes, sources, targets, rules, params))

    assert out.shape == (N_RULES,) and out_f32.shape == (N_RULES,)
    assert bool(jnp.all(jnp.isfinite(out))) and bool(jnp.all(jnp.isfinite(out_f32)))
    # f32 kernel vs direct f32 reference: tight structural-correctness check
    # (validates padding, adjacency stacking, block-diag weights, BN folding).
    assert jnp.allclose(out_f32, ref, rtol=2e-2, atol=2e-2), (out_f32, ref)
    # bf16 kernel vs f32 reference: bound the 24-layer bf16 drift in relative L2.
    rel = jnp.linalg.norm(out - ref) / (jnp.linalg.norm(ref) + 1e-6)
    assert float(rel) < 0.2, (float(rel), out, ref)

    print("KERNEL_OK")
</pallas_src>

<mosaic_0001>
module attributes {stable_mosaic.version = 11 : i64} {
  func.func @gnn_kernel(%arg0: memref<1xf32, #tpu.memory_space<smem>>, %arg1: memref<256x128xbf16, #tpu.memory_space<vmem>>, %arg2: memref<128x64xf32, #tpu.memory_space<vmem>>, %arg3: memref<24x128x128xf32, #tpu.memory_space<vmem>>, %arg4: memref<24x1x128xf32, #tpu.memory_space<vmem>>, %arg5: memref<128x64xf32, #tpu.memory_space<vmem>>) attributes {dimension_semantics = [], scalar_prefetch = 0 : i64, scratch_operands = 0 : i64, tpu.core_type = #tpu.core_type<tc>} {
    %c0 = arith.constant 0 : index
    %0 = memref.load %arg0[%c0] : memref<1xf32, #tpu.memory_space<smem>>
    %c0_0 = arith.constant 0 : index
    %c0_1 = arith.constant 0 : index
    %1 = vector.load %arg2[%c0_0, %c0_1] : memref<128x64xf32, #tpu.memory_space<vmem>>, vector<128x64xf32>
    %c0_i32 = arith.constant 0 : i32
    %c24_i32 = arith.constant 24 : i32
    %2 = arith.addi %c0_i32, %c24_i32 : i32
    %c1_i32 = arith.constant 1 : i32
    %3 = scf.for %arg6 = %c0_i32 to %2 step %c1_i32 iter_args(%arg7 = %1) -> (vector<128x64xf32>)  : i32 {
      %5 = arith.truncf %arg7 : vector<128x64xf32> to vector<128x64xbf16>
      %c0_5 = arith.constant 0 : index
      %c0_6 = arith.constant 0 : index
      %6 = vector.load %arg1[%c0_5, %c0_6] : memref<256x128xbf16, #tpu.memory_space<vmem>>, vector<256x128xbf16>
      %cst = arith.constant dense<0.000000e+00> : vector<256x64xf32>
      %7 = tpu.matmul %6, %5, %cst {dimension_numbers = #tpu.dot_dimension_numbers<[1], [0], [0], [1], [0, 0, 1, 1], [], []>} : vector<256x128xbf16>, vector<128x64xbf16>, vector<256x64xf32> -> vector<256x64xf32>
      %8 = vector.extract_strided_slice %7 {offsets = [0, 0], sizes = [128, 64], strides = [1, 1]} : vector<256x64xf32> to vector<128x64xf32>
      %9 = vector.extract_strided_slice %7 {offsets = [128, 0], sizes = [128, 64], strides = [1, 1]} : vector<256x64xf32> to vector<128x64xf32>
      %10 = arith.mulf %7, %7 : vector<256x64xf32>
      %cst_7 = arith.constant dense<0.000000e+00> : vector<64xf32>
      %11 = vector.multi_reduction <add>, %8, %cst_7 [0] : vector<128x64xf32> to vector<64xf32>
      %12 = vector.shape_cast %11 : vector<64xf32> to vector<1x64xf32>
      %13 = vector.broadcast %0 : f32 to vector<1x64xf32>
      %14 = arith.mulf %12, %13 : vector<1x64xf32>
      %cst_8 = arith.constant dense<0.000000e+00> : vector<64xf32>
      %15 = vector.multi_reduction <add>, %9, %cst_8 [0] : vector<128x64xf32> to vector<64xf32>
      %16 = vector.shape_cast %15 : vector<64xf32> to vector<1x64xf32>
      %17 = vector.broadcast %0 : f32 to vector<1x64xf32>
      %18 = arith.mulf %16, %17 : vector<1x64xf32>
      %19 = vector.extract_strided_slice %10 {offsets = [0, 0], sizes = [128, 64], strides = [1, 1]} : vector<256x64xf32> to vector<128x64xf32>
      %cst_9 = arith.constant dense<0.000000e+00> : vector<64xf32>
      %20 = vector.multi_reduction <add>, %19, %cst_9 [0] : vector<128x64xf32> to vector<64xf32>
      %21 = vector.shape_cast %20 : vector<64xf32> to vector<1x64xf32>
      %22 = vector.broadcast %0 : f32 to vector<1x64xf32>
      %23 = arith.mulf %21, %22 : vector<1x64xf32>
      %24 = vector.extract_strided_slice %10 {offsets = [128, 0], sizes = [128, 64], strides = [1, 1]} : vector<256x64xf32> to vector<128x64xf32>
      %cst_10 = arith.constant dense<0.000000e+00> : vector<64xf32>
      %25 = vector.multi_reduction <add>, %24, %cst_10 [0] : vector<128x64xf32> to vector<64xf32>
      %26 = vector.shape_cast %25 : vector<64xf32> to vector<1x64xf32>
      %27 = vector.broadcast %0 : f32 to vector<1x64xf32>
      %28 = arith.mulf %26, %27 : vector<1x64xf32>
      %29 = arith.mulf %14, %14 : vector<1x64xf32>
      %30 = arith.subf %23, %29 : vector<1x64xf32>
      %cst_11 = arith.constant 0.000000e+00 : f32
      %31 = vector.broadcast %cst_11 : f32 to vector<1x64xf32>
      %32 = arith.maximumf %30, %31 : vector<1x64xf32>
      %33 = arith.mulf %18, %18 : vector<1x64xf32>
      %34 = arith.subf %28, %33 : vector<1x64xf32>
      %cst_12 = arith.constant 0.000000e+00 : f32
      %35 = vector.broadcast %cst_12 : f32 to vector<1x64xf32>
      %36 = arith.maximumf %34, %35 : vector<1x64xf32>
      %cst_13 = arith.constant 9.99999974E-6 : f32
      %37 = vector.broadcast %cst_13 : f32 to vector<1x64xf32>
      %38 = arith.addf %32, %37 : vector<1x64xf32>
      %39 = math.rsqrt %38 : vector<1x64xf32>
      %cst_14 = arith.constant 9.99999974E-6 : f32
      %40 = vector.broadcast %cst_14 : f32 to vector<1x64xf32>
      %41 = arith.addf %36, %40 : vector<1x64xf32>
      %42 = math.rsqrt %41 : vector<1x64xf32>
      %43 = vector.shape_cast %39 : vector<1x64xf32> to vector<64x1xf32>
      %44 = vector.shape_cast %42 : vector<1x64xf32> to vector<64x1xf32>
      %45 = tpu.concatenate %43, %44 in 0 : vector<64x1xf32>, vector<64x1xf32> -> vector<128x1xf32>
      %46 = vector.shape_cast %14 : vector<1x64xf32> to vector<64x1xf32>
      %47 = vector.shape_cast %18 : vector<1x64xf32> to vector<64x1xf32>
      %48 = tpu.concatenate %46, %47 in 0 : vector<64x1xf32>, vector<64x1xf32> -> vector<128x1xf32>
      %49 = arith.index_cast %arg6 : i32 to index
      %c0_15 = arith.constant 0 : index
      %c0_16 = arith.constant 0 : index
      %50 = vector.load %arg3[%49, %c0_15, %c0_16] : memref<24x128x128xf32, #tpu.memory_space<vmem>>, vector<1x128x128xf32>
      %51 = vector.shape_cast %50 : vector<1x128x128xf32> to vector<128x128xf32>
      %52 = vector.broadcast %45 : vector<128x1xf32> to vector<128x128xf32>
      %53 = arith.mulf %52, %51 : vector<128x128xf32>
      %54 = arith.index_cast %arg6 : i32 to index
      %c0_17 = arith.constant 0 : index
      %c0_18 = arith.constant 0 : index
      %55 = vector.load %arg4[%54, %c0_17, %c0_18] : memref<24x1x128xf32, #tpu.memory_space<vmem>>, vector<1x1x128xf32>
      %56 = vector.shape_cast %55 : vector<1x1x128xf32> to vector<1x128xf32>
      %57 = vector.broadcast %48 : vector<128x1xf32> to vector<128x128xf32>
      %58 = arith.mulf %57, %53 : vector<128x128xf32>
      %cst_19 = arith.constant dense<0.000000e+00> : vector<128xf32>
      %59 = vector.multi_reduction <add>, %58, %cst_19 [0] : vector<128x128xf32> to vector<128xf32>
      %60 = vector.shape_cast %59 : vector<128xf32> to vector<1x128xf32>
      %61 = arith.subf %56, %60 : vector<1x128xf32>
      %62 = arith.truncf %53 : vector<128x128xf32> to vector<128x128xbf16>
      %63 = arith.truncf %8 : vector<128x64xf32> to vector<128x64xbf16>
      %64 = vector.extract_strided_slice %62 {offsets = [0, 0], sizes = [64, 128], strides = [1, 1]} : vector<128x128xbf16> to vector<64x128xbf16>
      %cst_20 = arith.constant dense<0.000000e+00> : vector<128x128xf32>
      %65 = tpu.matmul %63, %64, %cst_20 {dimension_numbers = #tpu.dot_dimension_numbers<[1], [0], [0], [1], [0, 0, 1, 1], [], []>} : vector<128x64xbf16>, vector<64x128xbf16>, vector<128x128xf32> -> vector<128x128xf32>
      %66 = arith.truncf %9 : vector<128x64xf32> to vector<128x64xbf16>
      %67 = vector.extract_strided_slice %62 {offsets = [64, 0], sizes = [64, 128], strides = [1, 1]} : vector<128x128xbf16> to vector<64x128xbf16>
      %cst_21 = arith.constant dense<0.000000e+00> : vector<128x128xf32>
      %68 = tpu.matmul %66, %67, %cst_21 {dimension_numbers = #tpu.dot_dimension_numbers<[1], [0], [0], [1], [0, 0, 1, 1], [], []>} : vector<128x64xbf16>, vector<64x128xbf16>, vector<128x128xf32> -> vector<128x128xf32>
      %69 = arith.addf %65, %68 : vector<128x128xf32>
      %70 = vector.broadcast %61 : vector<1x128xf32> to vector<128x128xf32>
      %71 = arith.addf %69, %70 : vector<128x128xf32>
      %cst_22 = arith.constant 0.000000e+00 : f32
      %72 = vector.broadcast %cst_22 : f32 to vector<128x128xf32>
      %73 = arith.maximumf %71, %72 : vector<128x128xf32>
      %74 = vector.extract_strided_slice %73 {offsets = [0, 0], sizes = [128, 64], strides = [1, 1]} : vector<128x128xf32> to vector<128x64xf32>
      %75 = vector.extract_strided_slice %73 {offsets = [0, 64], sizes = [128, 64], strides = [1, 1]} : vector<128x128xf32> to vector<128x64xf32>
      %76 = arith.addf %74, %75 : vector<128x64xf32>
      %77 = arith.addf %arg7, %76 : vector<128x64xf32>
      scf.yield %77 : vector<128x64xf32>
    }
    %c24_i32_2 = arith.constant 24 : i32
    %c0_3 = arith.constant 0 : index
    %c0_4 = arith.constant 0 : index
    %4 = vector.load %arg5[%c0_3, %c0_4] : memref<128x64xf32, #tpu.memory_space<vmem>>, vector<128x64xf32>
    tpu.vector_store %arg5[%c0_3, %c0_4], %3 {strides = array<i32>} : memref<128x64xf32, #tpu.memory_space<vmem>>, vector<128x64xf32>,
    return
  }
}

</mosaic_0001>

<llo_original>
// kernel: model_forward.1
$region0: #{model_forward.1}
  #allocation0 [shape = 'u32[]', space=smem, size = 0x4, offset = 0x4, fixed_abs, tag = 'smem constant byte address 0x4 - core index']
  #allocation1 [shape = 'u32[72,128]{1,0:T(1,128)}', space=vmem, size = 0x9000, scoped, tag = 'internal scratch']
  #allocation2 [shape = 'f32[1]{0:T(128)S(6)}', space=smem, size = 0x200, scoped, tag = 'scoped memory for model_forward.1']
  %s0 = inlined_call_operand.<no memory space> [shape: f32[1], index: 0, kind: input, shape index: {}]
  %s1 = inlined_call_operand.vmem [shape: bf16[256,128], index: 1, kind: input, shape index: {}]
  %s2 = inlined_call_operand.vmem [shape: f32[128,64], index: 2, kind: input, shape index: {}]
  %s3 = inlined_call_operand.vmem [shape: f32[24,128,128], index: 3, kind: input, shape index: {}]
  %s4 = inlined_call_operand.vmem [shape: f32[24,1,128], index: 4, kind: input, shape index: {}]
  %s5 = inlined_call_operand.vmem [shape: f32[128,64], index: 5, kind: output, shape index: {}]
  %s6 = sld [smem:[#allocation0]]
  $region37: #{model_forward.1} parent=0
    _
  %s8 = ssub.s32 1, %s6
  %s9 = scalar_select 0, %s8, %s6
  %10 = sst [smem:[#allocation2]] %s0
  // Predicated region
  $region2: #{model_forward.1} parent=0 // pred_check
    _
  $region3: #{model_forward.1} parent=0 // pred_check_branch
    %12 = sbr.rel (0) target = $region5
  $region4: #{model_forward.1} parent=0 // pred_region
    _
  $region5: #{model_forward.1} parent=0 // pred_fallthru
    _
  // Predicated region
  $region6: #{model_forward.1} parent=0 // pred_check
    _
  $region7: #{model_forward.1} parent=0 // pred_check_branch
    %14 = sbr.rel (0) target = $region9
  $region8: #{model_forward.1} parent=0 // pred_region
    _
  $region9: #{model_forward.1} parent=0 // pred_fallthru
    _
  // Predicated region
  $region10: #{model_forward.1} parent=0 // pred_check
    _
  $region11: #{model_forward.1} parent=0 // pred_check_branch
    %16 = sbr.rel (0) target = $region13
  $region12: #{model_forward.1} parent=0 // pred_region
    _
  $region13: #{model_forward.1} parent=0 // pred_fallthru
    _
  // Predicated region
  $region14: #{model_forward.1} parent=0 // pred_check
    _
  $region15: #{model_forward.1} parent=0 // pred_check_branch
    %18 = sbr.rel (0) target = $region17
  $region16: #{model_forward.1} parent=0 // pred_region
    _
  $region17: #{model_forward.1} parent=0 // pred_fallthru
    _
  // Predicated region
  $region18: #{model_forward.1} parent=0 // pred_check
    _
  $region19: #{model_forward.1} parent=0 // pred_check_branch
    %20 = sbr.rel (0) target = $region21
  $region20: #{model_forward.1} parent=0 // pred_region
    _
  $region21: #{model_forward.1} parent=0 // pred_fallthru
    _
  %s22 = sld [smem:[#allocation2]]
  %v23 = vld [vmem:[%s2] sm:$0xff]
  %v24 = vld [vmem:[%s2 + $0x8] sm:$0xff]
  %v25 = vld [vmem:[%s2 + $0x10] sm:$0xff]
  %v26 = vld [vmem:[%s2 + $0x18] sm:$0xff]
  %v27 = vld [vmem:[%s2 + $0x20] sm:$0xff]
  %v28 = vld [vmem:[%s2 + $0x28] sm:$0xff]
  %v29 = vld [vmem:[%s2 + $0x30] sm:$0xff]
  %v30 = vld [vmem:[%s2 + $0x38] sm:$0xff]
  %v31 = vld [vmem:[%s2 + $0x40] sm:$0xff]
  %v32 = vld [vmem:[%s2 + $0x48] sm:$0xff]
  %v33 = vld [vmem:[%s2 + $0x50] sm:$0xff]
  %v34 = vld [vmem:[%s2 + $0x58] sm:$0xff]
  %v35 = vld [vmem:[%s2 + $0x60] sm:$0xff]
  %v36 = vld [vmem:[%s2 + $0x68] sm:$0xff]
  %v37 = vld [vmem:[%s2 + $0x70] sm:$0xff]
  %v38 = vld [vmem:[%s2 + $0x78] sm:$0xff]
  loop: start=0, step=1, limit=24
  $region22: #{model_forward.1} parent=0 // loop_pre_header
    _
  $region23: #{model_forward.1} parent=0 // loop_header
    %s40 = sphi 0, %s44
    %p41 = scmp.ge.s32.totalorder %s40, 24
    %v45 = vphi %v23, %v1267
    %v46 = vphi %v24, %v1268
    %v47 = vphi %v25, %v1269
    %v48 = vphi %v26, %v1270
    %v49 = vphi %v27, %v1271
    %v50 = vphi %v28, %v1272
    %v51 = vphi %v29, %v1273
    %v52 = vphi %v30, %v1274
    %v53 = vphi %v31, %v1275
    %v54 = vphi %v32, %v1276
    %v55 = vphi %v33, %v1277
    %v56 = vphi %v34, %v1278
    %v57 = vphi %v35, %v1279
    %v58 = vphi %v36, %v1280
    %v59 = vphi %v37, %v1281
    %v60 = vphi %v38, %v1282
  $region24: #{model_forward.1} parent=0 // loop_header_branch
    %43 = sbr.rel (%p41) target = $region28
  $region25: #{model_forward.1} parent=0 // loop_body
    %v61 = vpack.c.bf16 %v46, %v45
    %v62 = vpack.c.bf16 %v48, %v47
    %v63 = vpack.c.bf16 %v50, %v49
    %v64 = vpack.c.bf16 %v52, %v51
    %v65 = vpack.c.bf16 %v54, %v53
    %v66 = vpack.c.bf16 %v56, %v55
    %v67 = vpack.c.bf16 %v58, %v57
    %v68 = vpack.c.bf16 %v60, %v59
    %v69 = vld [vmem:[%s1] sm:$0xf]
    %v70 = vld [vmem:[%s1 + $0x4] sm:$0xf]
    %v71 = vld [vmem:[%s1 + $0x8] sm:$0xf]
    %v72 = vld [vmem:[%s1 + $0xc] sm:$0xf]
    %v73 = vld [vmem:[%s1 + $0x10] sm:$0xf]
    %v74 = vld [vmem:[%s1 + $0x14] sm:$0xf]
    %v75 = vld [vmem:[%s1 + $0x18] sm:$0xf]
    %v76 = vld [vmem:[%s1 + $0x1c] sm:$0xf]
    %v77 = vld [vmem:[%s1 + $0x20] sm:$0xf]
    %v78 = vld [vmem:[%s1 + $0x24] sm:$0xf]
    %v79 = vld [vmem:[%s1 + $0x28] sm:$0xf]
    %v80 = vld [vmem:[%s1 + $0x2c] sm:$0xf]
    %v81 = vld [vmem:[%s1 + $0x30] sm:$0xf]
    %v82 = vld [vmem:[%s1 + $0x34] sm:$0xf]
    %v83 = vld [vmem:[%s1 + $0x38] sm:$0xf]
    %v84 = vld [vmem:[%s1 + $0x3c] sm:$0xf]
    %v85 = vld [vmem:[%s1 + $0x40] sm:$0xf]
    %v86 = vld [vmem:[%s1 + $0x44] sm:$0xf]
    %v87 = vld [vmem:[%s1 + $0x48] sm:$0xf]
    %v88 = vld [vmem:[%s1 + $0x4c] sm:$0xf]
    %v89 = vld [vmem:[%s1 + $0x50] sm:$0xf]
    %v90 = vld [vmem:[%s1 + $0x54] sm:$0xf]
    %v91 = vld [vmem:[%s1 + $0x58] sm:$0xf]
    %v92 = vld [vmem:[%s1 + $0x5c] sm:$0xf]
    %v93 = vld [vmem:[%s1 + $0x60] sm:$0xf]
    %v94 = vld [vmem:[%s1 + $0x64] sm:$0xf]
    %v95 = vld [vmem:[%s1 + $0x68] sm:$0xf]
    %v96 = vld [vmem:[%s1 + $0x6c] sm:$0xf]
    %v97 = vld [vmem:[%s1 + $0x70] sm:$0xf]
    %v98 = vld [vmem:[%s1 + $0x74] sm:$0xf]
    %v99 = vld [vmem:[%s1 + $0x78] sm:$0xf]
    %v100 = vld [vmem:[%s1 + $0x7c] sm:$0xf]
    %v133 = vunpack.c.l.b16 %v69
    %v134 = vunpack.c.l.b16 %v70
    %v135 = vunpack.c.l.b16 %v71
    %v136 = vunpack.c.l.b16 %v72
    %v137 = vunpack.c.l.b16 %v73
    %v138 = vunpack.c.l.b16 %v74
    %v139 = vunpack.c.l.b16 %v75
    %v140 = vunpack.c.l.b16 %v76
    %v141 = vunpack.c.l.b16 %v77
    %v142 = vunpack.c.l.b16 %v78
    %v143 = vunpack.c.l.b16 %v79
    %v144 = vunpack.c.l.b16 %v80
    %v145 = vunpack.c.l.b16 %v81
    %v146 = vunpack.c.l.b16 %v82
    %v147 = vunpack.c.l.b16 %v83
    %v148 = vunpack.c.l.b16 %v84
    %v149 = vunpack.c.l.b16 %v85
    %v150 = vunpack.c.l.b16 %v86
    %v151 = vunpack.c.l.b16 %v87
    %v152 = vunpack.c.l.b16 %v88
    %v153 = vunpack.c.l.b16 %v89
    %v154 = vunpack.c.l.b16 %v90
    %v155 = vunpack.c.l.b16 %v91
    %v156 = vunpack.c.l.b16 %v92
    %v157 = vunpack.c.l.b16 %v93
    %v158 = vunpack.c.l.b16 %v94
    %v159 = vunpack.c.l.b16 %v95
    %v160 = vunpack.c.l.b16 %v96
    %v161 = vunpack.c.l.b16 %v97
    %v162 = vunpack.c.l.b16 %v98
    %v163 = vunpack.c.l.b16 %v99
    %v164 = vunpack.c.l.b16 %v100
    %v165 = vpack.c.b16 %v134, %v133
    %v166 = vpack.c.b16 %v136, %v135
    %v167 = vpack.c.b16 %v138, %v137
    %v168 = vpack.c.b16 %v140, %v139
    %v169 = vpack.c.b16 %v142, %v141
    %v170 = vpack.c.b16 %v144, %v143
    %v171 = vpack.c.b16 %v146, %v145
    %v172 = vpack.c.b16 %v148, %v147
    %v173 = vpack.c.b16 %v150, %v149
    %v174 = vpack.c.b16 %v152, %v151
    %v175 = vpack.c.b16 %v154, %v153
    %v176 = vpack.c.b16 %v156, %v155
    %v177 = vpack.c.b16 %v158, %v157
    %v178 = vpack.c.b16 %v160, %v159
    %v179 = vpack.c.b16 %v162, %v161
    %v180 = vpack.c.b16 %v164, %v163
    %197 = vmatpush.bf16.msra.mxu0 %v68
    %198 = vmatpush.bf16.msra.mxu0 %v67
    %199 = vmatpush.bf16.msra.mxu0 %v66
    %200 = vmatpush.bf16.msra.mxu0 %v65
    %201 = vmatpush.bf16.msra.mxu0 %v64
    %202 = vmatpush.bf16.msra.mxu0 %v63
    %203 = vmatpush.bf16.msra.mxu0 %v62
    %204 = vmatpush.bf16.msra.mxu0 %v61
    %205 = vmatmul.bf16.gmra.mxu0 %v165
    %v206 = vpop.f32.mrf.mxu0
    %v207 = vadd.f32 0.0, %v206
    %v208 = vpop.f32.mrf.mxu0
    %v209 = vadd.f32 0.0, %v208
    %210 = vmatmul.bf16.gmra.mxu0 %v166
    %v211 = vpop.f32.mrf.mxu0
    %v212 = vadd.f32 0.0, %v211
    %v213 = vpop.f32.mrf.mxu0
    %v214 = vadd.f32 0.0, %v213
    %215 = vmatmul.bf16.gmra.mxu0 %v167
    %v216 = vpop.f32.mrf.mxu0
    %v217 = vadd.f32 0.0, %v216
    %v218 = vpop.f32.mrf.mxu0
    %v219 = vadd.f32 0.0, %v218
    %220 = vmatmul.bf16.gmra.mxu0 %v168
    %v221 = vpop.f32.mrf.mxu0
    %v222 = vadd.f32 0.0, %v221
    %v223 = vpop.f32.mrf.mxu0
    %v224 = vadd.f32 0.0, %v223
    %225 = vmatmul.bf16.gmra.mxu0 %v169
    %v226 = vpop.f32.mrf.mxu0
    %v227 = vadd.f32 0.0, %v226
    %v228 = vpop.f32.mrf.mxu0
    %v229 = vadd.f32 0.0, %v228
    %230 = vmatmul.bf16.gmra.mxu0 %v170
    %v231 = vpop.f32.mrf.mxu0
    %v232 = vadd.f32 0.0, %v231
    %v233 = vpop.f32.mrf.mxu0
    %v234 = vadd.f32 0.0, %v233
    %235 = vmatmul.bf16.gmra.mxu0 %v171
    %v236 = vpop.f32.mrf.mxu0
    %v237 = vadd.f32 0.0, %v236
    %v238 = vpop.f32.mrf.mxu0
    %v239 = vadd.f32 0.0, %v238
    %240 = vmatmul.bf16.gmra.mxu0 %v172
    %v241 = vpop.f32.mrf.mxu0
    %v242 = vadd.f32 0.0, %v241
    %v243 = vpop.f32.mrf.mxu0
    %v244 = vadd.f32 0.0, %v243
    %245 = vmatmul.bf16.gmra.mxu0 %v173
    %v246 = vpop.f32.mrf.mxu0
    %v247 = vadd.f32 0.0, %v246
    %v248 = vpop.f32.mrf.mxu0
    %v249 = vadd.f32 0.0, %v248
    %250 = vmatmul.bf16.gmra.mxu0 %v174
    %v251 = vpop.f32.mrf.mxu0
    %v252 = vadd.f32 0.0, %v251
    %v253 = vpop.f32.mrf.mxu0
    %v254 = vadd.f32 0.0, %v253
    %255 = vmatmul.bf16.gmra.mxu0 %v175
    %v256 = vpop.f32.mrf.mxu0
    %v257 = vadd.f32 0.0, %v256
    %v258 = vpop.f32.mrf.mxu0
    %v259 = vadd.f32 0.0, %v258
    %260 = vmatmul.bf16.gmra.mxu0 %v176
    %v261 = vpop.f32.mrf.mxu0
    %v262 = vadd.f32 0.0, %v261
    %v263 = vpop.f32.mrf.mxu0
    %v264 = vadd.f32 0.0, %v263
    %265 = vmatmul.bf16.gmra.mxu0 %v177
    %v266 = vpop.f32.mrf.mxu0
    %v267 = vadd.f32 0.0, %v266
    %v268 = vpop.f32.mrf.mxu0
    %v269 = vadd.f32 0.0, %v268
    %270 = vmatmul.bf16.gmra.mxu0 %v178
    %v271 = vpop.f32.mrf.mxu0
    %v272 = vadd.f32 0.0, %v271
    %v273 = vpop.f32.mrf.mxu0
    %v274 = vadd.f32 0.0, %v273
    %275 = vmatmul.bf16.gmra.mxu0 %v179
    %v276 = vpop.f32.mrf.mxu0
    %v277 = vadd.f32 0.0, %v276
    %v278 = vpop.f32.mrf.mxu0
    %v279 = vadd.f32 0.0, %v278
    %280 = vmatmul.bf16.gmra.mxu0 %v180
    %v281 = vpop.f32.mrf.mxu0
    %v282 = vadd.f32 0.0, %v281
    %v283 = vpop.f32.mrf.mxu0
    %v284 = vadd.f32 0.0, %v283
    %285 = vdwg.mxu0
    %v286 = vmul.f32 %v207, %v207
    %v287 = vmul.f32 %v209, %v209
    %v288 = vmul.f32 %v212, %v212
    %v289 = vmul.f32 %v214, %v214
    %v290 = vmul.f32 %v217, %v217
    %v291 = vmul.f32 %v219, %v219
    %v292 = vmul.f32 %v222, %v222
    %v293 = vmul.f32 %v224, %v224
    %v294 = vmul.f32 %v227, %v227
    %v295 = vmul.f32 %v229, %v229
    %v296 = vmul.f32 %v232, %v232
    %v297 = vmul.f32 %v234, %v234
    %v298 = vmul.f32 %v237, %v237
    %v299 = vmul.f32 %v239, %v239
    %v300 = vmul.f32 %v242, %v242
    %v301 = vmul.f32 %v244, %v244
    %v302 = vmul.f32 %v247, %v247
    %v303 = vmul.f32 %v249, %v249
    %v304 = vmul.f32 %v252, %v252
    %v305 = vmul.f32 %v254, %v254
    %v306 = vmul.f32 %v257, %v257
    %v307 = vmul.f32 %v259, %v259
    %v308 = vmul.f32 %v262, %v262
    %v309 = vmul.f32 %v264, %v264
    %v310 = vmul.f32 %v267, %v267
    %v311 = vmul.f32 %v269, %v269
    %v312 = vmul.f32 %v272, %v272
    %v313 = vmul.f32 %v274, %v274
    %v314 = vmul.f32 %v277, %v277
    %v315 = vmul.f32 %v279, %v279
    %v316 = vmul.f32 %v282, %v282
    %v317 = vmul.f32 %v284, %v284
    %vm318 = vcmask 523264
    %v319 = vsel %vm318, %v207, 0.0
    %v320 = vsel %vm318, %v209, 0.0
    %v321 = vadd.f32 %v319, %v320
    %v322 = vsel %vm318, %v212, 0.0
    %v323 = vadd.f32 %v321, %v322
    %v324 = vsel %vm318, %v214, 0.0
    %v325 = vadd.f32 %v323, %v324
    %v326 = vsel %vm318, %v217, 0.0
    %v327 = vadd.f32 %v325, %v326
    %v328 = vsel %vm318, %v219, 0.0
    %v329 = vadd.f32 %v327, %v328
    %v330 = vsel %vm318, %v222, 0.0
    %v331 = vadd.f32 %v329, %v330
    %v332 = vsel %vm318, %v224, 0.0
    %v333 = vadd.f32 %v331, %v332
    %v334 = vsel %vm318, %v227, 0.0
    %v335 = vadd.f32 %v333, %v334
    %v336 = vsel %vm318, %v229, 0.0
    %v337 = vadd.f32 %v335, %v336
    %v338 = vsel %vm318, %v232, 0.0
    %v339 = vadd.f32 %v337, %v338
    %v340 = vsel %vm318, %v234, 0.0
    %v341 = vadd.f32 %v339, %v340
    %v342 = vsel %vm318, %v237, 0.0
    %v343 = vadd.f32 %v341, %v342
    %v344 = vsel %vm318, %v239, 0.0
    %v345 = vadd.f32 %v343, %v344
    %v346 = vsel %vm318, %v242, 0.0
    %v347 = vadd.f32 %v345, %v346
    %v348 = vsel %vm318, %v244, 0.0
    %v349 = vadd.f32 %v347, %v348
    %v350 = vrot.slane %v349, 4
    %v351 = vadd.f32 %v349, %v350
    %v352 = vrot.slane %v351, 2
    %v353 = vadd.f32 %v351, %v352
    %v354 = vrot.slane %v353, 1
    %v355 = vadd.f32 %v353, %v354
    %v356 = vstv %s22
    %v357 = vmul.f32 %v355, %v356
    %v358 = vsel %vm318, %v247, 0.0
    %v359 = vsel %vm318, %v249, 0.0
    %v360 = vadd.f32 %v358, %v359
    %v361 = vsel %vm318, %v252, 0.0
    %v362 = vadd.f32 %v360, %v361
    %v363 = vsel %vm318, %v254, 0.0
    %v364 = vadd.f32 %v362, %v363
    %v365 = vsel %vm318, %v257, 0.0
    %v366 = vadd.f32 %v364, %v365
    %v367 = vsel %vm318, %v259, 0.0
    %v368 = vadd.f32 %v366, %v367
    %v369 = vsel %vm318, %v262, 0.0
    %v370 = vadd.f32 %v368, %v369
    %v371 = vsel %vm318, %v264, 0.0
    %v372 = vadd.f32 %v370, %v371
    %v373 = vsel %vm318, %v267, 0.0
    %v374 = vadd.f32 %v372, %v373
    %v375 = vsel %vm318, %v269, 0.0
    %v376 = vadd.f32 %v374, %v375
    %v377 = vsel %vm318, %v272, 0.0
    %v378 = vadd.f32 %v376, %v377
    %v379 = vsel %vm318, %v274, 0.0
    %v380 = vadd.f32 %v378, %v379
    %v381 = vsel %vm318, %v277, 0.0
    %v382 = vadd.f32 %v380, %v381
    %v383 = vsel %vm318, %v279, 0.0
    %v384 = vadd.f32 %v382, %v383
    %v385 = vsel %vm318, %v282, 0.0
    %v386 = vadd.f32 %v384, %v385
    %v387 = vsel %vm318, %v284, 0.0
    %v388 = vadd.f32 %v386, %v387
    %v389 = vrot.slane %v388, 4
    %v390 = vadd.f32 %v388, %v389
    %v391 = vrot.slane %v390, 2
    %v392 = vadd.f32 %v390, %v391
    %v393 = vrot.slane %v392, 1
    %v394 = vadd.f32 %v392, %v393
    %v395 = vmul.f32 %v394, %v356
    %v396 = vsel %vm318, %v286, 0.0
    %v397 = vsel %vm318, %v287, 0.0
    %v398 = vadd.f32 %v396, %v397
    %v399 = vsel %vm318, %v288, 0.0
    %v400 = vadd.f32 %v398, %v399
    %v401 = vsel %vm318, %v289, 0.0
    %v402 = vadd.f32 %v400, %v401
    %v403 = vsel %vm318, %v290, 0.0
    %v404 = vadd.f32 %v402, %v403
    %v405 = vsel %vm318, %v291, 0.0
    %v406 = vadd.f32 %v404, %v405
    %v407 = vsel %vm318, %v292, 0.0
    %v408 = vadd.f32 %v406, %v407
    %v409 = vsel %vm318, %v293, 0.0
    %v410 = vadd.f32 %v408, %v409
    %v411 = vsel %vm318, %v294, 0.0
    %v412 = vadd.f32 %v410, %v411
    %v413 = vsel %vm318, %v295, 0.0
    %v414 = vadd.f32 %v412, %v413
    %v415 = vsel %vm318, %v296, 0.0
    %v416 = vadd.f32 %v414, %v415
    %v417 = vsel %vm318, %v297, 0.0
    %v418 = vadd.f32 %v416, %v417
    %v419 = vsel %vm318, %v298, 0.0
    %v420 = vadd.f32 %v418, %v419
    %v421 = vsel %vm318, %v299, 0.0
    %v422 = vadd.f32 %v420, %v421
    %v423 = vsel %vm318, %v300, 0.0
    %v424 = vadd.f32 %v422, %v423
    %v425 = vsel %vm318, %v301, 0.0
    %v426 = vadd.f32 %v424, %v425
    %v427 = vrot.slane %v426, 4
    %v428 = vadd.f32 %v426, %v427
    %v429 = vrot.slane %v428, 2
    %v430 = vadd.f32 %v428, %v429
    %v431 = vrot.slane %v430, 1
    %v432 = vadd.f32 %v430, %v431
    %v433 = vmul.f32 %v432, %v356
    %v434 = vsel %vm318, %v302, 0.0
    %v435 = vsel %vm318, %v303, 0.0
    %v436 = vadd.f32 %v434, %v435
    %v437 = vsel %vm318, %v304, 0.0
    %v438 = vadd.f32 %v436, %v437
    %v439 = vsel %vm318, %v305, 0.0
    %v440 = vadd.f32 %v438, %v439
    %v441 = vsel %vm318, %v306, 0.0
    %v442 = vadd.f32 %v440, %v441
    %v443 = vsel %vm318, %v307, 0.0
    %v444 = vadd.f32 %v442, %v443
    %v445 = vsel %vm318, %v308, 0.0
    %v446 = vadd.f32 %v444, %v445
    %v447 = vsel %vm318, %v309, 0.0
    %v448 = vadd.f32 %v446, %v447
    %v449 = vsel %vm318, %v310, 0.0
    %v450 = vadd.f32 %v448, %v449
    %v451 = vsel %vm318, %v311, 0.0
    %v452 = vadd.f32 %v450, %v451
    %v453 = vsel %vm318, %v312, 0.0
    %v454 = vadd.f32 %v452, %v453
    %v455 = vsel %vm318, %v313, 0.0
    %v456 = vadd.f32 %v454, %v455
    %v457 = vsel %vm318, %v314, 0.0
    %v458 = vadd.f32 %v456, %v457
    %v459 = vsel %vm318, %v315, 0.0
    %v460 = vadd.f32 %v458, %v459
    %v461 = vsel %vm318, %v316, 0.0
    %v462 = vadd.f32 %v460, %v461
    %v463 = vsel %vm318, %v317, 0.0
    %v464 = vadd.f32 %v462, %v463
    %v465 = vrot.slane %v464, 4
    %v466 = vadd.f32 %v464, %v465
    %v467 = vrot.slane %v466, 2
    %v468 = vadd.f32 %v466, %v467
    %v469 = vrot.slane %v468, 1
    %v470 = vadd.f32 %v468, %v469
    %v471 = vmul.f32 %v470, %v356
    %v472 = vmul.f32 %v357, %v357
    %v473 = vsub.f32 %v433, %v472
    %v474 = vmax.f32 %v473, 0.0
    %v475 = vmul.f32 %v395, %v395
    %v476 = vsub.f32 %v471, %v475
    %v477 = vmax.f32 %v476, 0.0
    %v478 = vadd.f32 %v474, 1e-05
    %v479 = vrsqrt.pop %v478
    %v480 = vmul.f32 %v479, %v478
    %v481 = vmul.f32 %v480, %v479
    %v482 = vmul.f32 0.5, %v481
    %v483 = vsub.f32 1.5, %v482
    %v484 = vmul.f32 %v479, %v483
    %vm485 = vweird.f32 %v478
    %vm486 = vweird.f32 %v479
    %vm487 = vmor %vm485, %vm486
    %v488 = vsel %vm487, %v479, %v484
    %v489 = vadd.f32 %v477, 1e-05
    %v490 = vrsqrt.pop %v489
    %v491 = vmul.f32 %v490, %v489
    %v492 = vmul.f32 %v491, %v490
    %v493 = vmul.f32 0.5, %v492
    %v494 = vsub.f32 1.5, %v493
    %v495 = vmul.f32 %v490, %v494
    %vm496 = vweird.f32 %v489
    %vm497 = vweird.f32 %v490
    %vm498 = vmor %vm496, %vm497
    %v499 = vsel %vm498, %v490, %v495
    %v500 = vlaneseq
    %v501 = vshrl.u32 %v500, 7
    %503 = vset.pattern.permute.xlu0 %v501
    %504 = vperm.xlu0 %503, %v488
    %v505 = vpop.permute.xlu0 %504
    %v506 = vlaneseq
    %v507 = vshrl.u32 %v506, 7
    %v508 = vadd.s32 %v507, 8
    %509 = vset.pattern.permute.xlu0 %v508
    %510 = vperm.xlu0 %509, %v488
    %v511 = vpop.permute.xlu0 %510
    %v512 = vlaneseq
    %v513 = vshrl.u32 %v512, 7
    %v514 = vadd.s32 %v513, 16
    %515 = vset.pattern.permute.xlu0 %v514
    %516 = vperm.xlu0 %515, %v488
    %v517 = vpop.permute.xlu0 %516
    %v518 = vlaneseq
    %v519 = vshrl.u32 %v518, 7
    %v520 = vadd.s32 %v519, 24
    %521 = vset.pattern.permute.xlu0 %v520
    %522 = vperm.xlu0 %521, %v488
    %v523 = vpop.permute.xlu0 %522
    %v524 = vlaneseq
    %v525 = vshrl.u32 %v524, 7
    %v526 = vadd.s32 %v525, 32
    %527 = vset.pattern.permute.xlu0 %v526
    %528 = vperm.xlu0 %527, %v488
    %v529 = vpop.permute.xlu0 %528
    %v530 = vlaneseq
    %v531 = vshrl.u32 %v530, 7
    %v532 = vadd.s32 %v531, 40
    %533 = vset.pattern.permute.xlu0 %v532
    %534 = vperm.xlu0 %533, %v488
    %v535 = vpop.permute.xlu0 %534
    %v536 = vlaneseq
    %v537 = vshrl.u32 %v536, 7
    %v538 = vadd.s32 %v537, 48
    %539 = vset.pattern.permute.xlu0 %v538
    %540 = vperm.xlu0 %539, %v488
    %v541 = vpop.permute.xlu0 %540
    %v542 = vlaneseq
    %v543 = vshrl.u32 %v542, 7
    %v544 = vadd.s32 %v543, 56
    %545 = vset.pattern.permute.xlu0 %v544
    %546 = vperm.xlu0 %545, %v488
    %v547 = vpop.permute.xlu0 %546
    %v548 = vlaneseq
    %v549 = vshrl.u32 %v548, 7
    %551 = vset.pattern.permute.xlu0 %v549
    %552 = vperm.xlu0 %551, %v499
    %v553 = vpop.permute.xlu0 %552
    %v554 = vlaneseq
    %v555 = vshrl.u32 %v554, 7
    %v556 = vadd.s32 %v555, 8
    %557 = vset.pattern.permute.xlu0 %v556
    %558 = vperm.xlu0 %557, %v499
    %v559 = vpop.permute.xlu0 %558
    %v560 = vlaneseq
    %v561 = vshrl.u32 %v560, 7
    %v562 = vadd.s32 %v561, 16
    %563 = vset.pattern.permute.xlu0 %v562
    %564 = vperm.xlu0 %563, %v499
    %v565 = vpop.permute.xlu0 %564
    %v566 = vlaneseq
    %v567 = vshrl.u32 %v566, 7
    %v568 = vadd.s32 %v567, 24
    %569 = vset.pattern.permute.xlu0 %v568
    %570 = vperm.xlu0 %569, %v499
    %v571 = vpop.permute.xlu0 %570
    %v572 = vlaneseq
    %v573 = vshrl.u32 %v572, 7
    %v574 = vadd.s32 %v573, 32
    %575 = vset.pattern.permute.xlu0 %v574
    %576 = vperm.xlu0 %575, %v499
    %v577 = vpop.permute.xlu0 %576
    %v578 = vlaneseq
    %v579 = vshrl.u32 %v578, 7
    %v580 = vadd.s32 %v579, 40
    %581 = vset.pattern.permute.xlu0 %v580
    %582 = vperm.xlu0 %581, %v499
    %v583 = vpop.permute.xlu0 %582
    %v584 = vlaneseq
    %v585 = vshrl.u32 %v584, 7
    %v586 = vadd.s32 %v585, 48
    %587 = vset.pattern.permute.xlu0 %v586
    %588 = vperm.xlu0 %587, %v499
    %v589 = vpop.permute.xlu0 %588
    %v590 = vlaneseq
    %v591 = vshrl.u32 %v590, 7
    %v592 = vadd.s32 %v591, 56
    %593 = vset.pattern.permute.xlu0 %v592
    %594 = vperm.xlu0 %593, %v499
    %v595 = vpop.permute.xlu0 %594
    %v596 = vlaneseq
    %v597 = vshrl.u32 %v596, 7
    %599 = vset.pattern.permute.xlu0 %v597
    %600 = vperm.xlu0 %599, %v357
    %v601 = vpop.permute.xlu0 %600
    %v602 = vlaneseq
    %v603 = vshrl.u32 %v602, 7
    %v604 = vadd.s32 %v603, 8
    %605 = vset.pattern.permute.xlu0 %v604
    %606 = vperm.xlu0 %605, %v357
    %v607 = vpop.permute.xlu0 %606
    %v608 = vlaneseq
    %v609 = vshrl.u32 %v608, 7
    %v610 = vadd.s32 %v609, 16
    %611 = vset.pattern.permute.xlu0 %v610
    %612 = vperm.xlu0 %611, %v357
    %v613 = vpop.permute.xlu0 %612
    %v614 = vlaneseq
    %v615 = vshrl.u32 %v614, 7
    %v616 = vadd.s32 %v615, 24
    %617 = vset.pattern.permute.xlu0 %v616
    %618 = vperm.xlu0 %617, %v357
    %v619 = vpop.permute.xlu0 %618
    %v620 = vlaneseq
    %v621 = vshrl.u32 %v620, 7
    %v622 = vadd.s32 %v621, 32
    %623 = vset.pattern.permute.xlu0 %v622
    %624 = vperm.xlu0 %623, %v357
    %v625 = vpop.permute.xlu0 %624
    %v626 = vlaneseq
    %v627 = vshrl.u32 %v626, 7
    %v628 = vadd.s32 %v627, 40
    %629 = vset.pattern.permute.xlu0 %v628
    %630 = vperm.xlu0 %629, %v357
    %v631 = vpop.permute.xlu0 %630
    %v632 = vlaneseq
    %v633 = vshrl.u32 %v632, 7
    %v634 = vadd.s32 %v633, 48
    %635 = vset.pattern.permute.xlu0 %v634
    %636 = vperm.xlu0 %635, %v357
    %v637 = vpop.permute.xlu0 %636
    %v638 = vlaneseq
    %v639 = vshrl.u32 %v638, 7
    %v640 = vadd.s32 %v639, 56
    %641 = vset.pattern.permute.xlu0 %v640
    %642 = vperm.xlu0 %641, %v357
    %v643 = vpop.permute.xlu0 %642
    %v644 = vlaneseq
    %v645 = vshrl.u32 %v644, 7
    %647 = vset.pattern.permute.xlu0 %v645
    %648 = vperm.xlu0 %647, %v395
    %v649 = vpop.permute.xlu0 %648
    %v650 = vlaneseq
    %v651 = vshrl.u32 %v650, 7
    %v652 = vadd.s32 %v651, 8
    %653 = vset.pattern.permute.xlu0 %v652
    %654 = vperm.xlu0 %653, %v395
    %v655 = vpop.permute.xlu0 %654
    %v656 = vlaneseq
    %v657 = vshrl.u32 %v656, 7
    %v658 = vadd.s32 %v657, 16
    %659 = vset.pattern.permute.xlu0 %v658
    %660 = vperm.xlu0 %659, %v395
    %v661 = vpop.permute.xlu0 %660
    %v662 = vlaneseq
    %v663 = vshrl.u32 %v662, 7
    %v664 = vadd.s32 %v663, 24
    %665 = vset.pattern.permute.xlu0 %v664
    %666 = vperm.xlu0 %665, %v395
    %v667 = vpop.permute.xlu0 %666
    %v668 = vlaneseq
    %v669 = vshrl.u32 %v668, 7
    %v670 = vadd.s32 %v669, 32
    %671 = vset.pattern.permute.xlu0 %v670
    %672 = vperm.xlu0 %671, %v395
    %v673 = vpop.permute.xlu0 %672
    %v674 = vlaneseq
    %v675 = vshrl.u32 %v674, 7
    %v676 = vadd.s32 %v675, 40
    %677 = vset.pattern.permute.xlu0 %v676
    %678 = vperm.xlu0 %677, %v395
    %v679 = vpop.permute.xlu0 %678
    %v680 = vlaneseq
    %v681 = vshrl.u32 %v680, 7
    %v682 = vadd.s32 %v681, 48
    %683 = vset.pattern.permute.xlu0 %v682
    %684 = vperm.xlu0 %683, %v395
    %v685 = vpop.permute.xlu0 %684
    %v686 = vlaneseq
    %v687 = vshrl.u32 %v686, 7
    %v688 = vadd.s32 %v687, 56
    %689 = vset.pattern.permute.xlu0 %v688
    %690 = vperm.xlu0 %689, %v395
    %v691 = vpop.permute.xlu0 %690
    %s692 = smul.u32 %s40, 128
    %s693 = scalar_lea.vmem %s3, %s692
    %v694 = vld [vmem:[%s693] sm:$0xff]
    %v695 = vld [vmem:[%s693 + $0x8] sm:$0xff]
    %v696 = vld [vmem:[%s693 + $0x10] sm:$0xff]
    %v697 = vld [vmem:[%s693 + $0x18] sm:$0xff]
    %v698 = vld [vmem:[%s693 + $0x20] sm:$0xff]
    %v699 = vld [vmem:[%s693 + $0x28] sm:$0xff]
    %v700 = vld [vmem:[%s693 + $0x30] sm:$0xff]
    %v701 = vld [vmem:[%s693 + $0x38] sm:$0xff]
    %v702 = vld [vmem:[%s693 + $0x40] sm:$0xff]
    %v703 = vld [vmem:[%s693 + $0x48] sm:$0xff]
    %v704 = vld [vmem:[%s693 + $0x50] sm:$0xff]
    %v705 = vld [vmem:[%s693 + $0x58] sm:$0xff]
    %v706 = vld [vmem:[%s693 + $0x60] sm:$0xff]
    %v707 = vld [vmem:[%s693 + $0x68] sm:$0xff]
    %v708 = vld [vmem:[%s693 + $0x70] sm:$0xff]
    %v709 = vld [vmem:[%s693 + $0x78] sm:$0xff]
    %711 = vset.pattern.permute.xlu0 0
    %712 = vperm.xlu0 %711, %v505
    %v713 = vpop.permute.xlu0 %712
    %716 = vset.pattern.permute.xlu0 0
    %717 = vperm.xlu0 %716, %v511
    %v718 = vpop.permute.xlu0 %717
    %721 = vset.pattern.permute.xlu0 0
    %722 = vperm.xlu0 %721, %v517
    %v723 = vpop.permute.xlu0 %722
    %726 = vset.pattern.permute.xlu0 0
    %727 = vperm.xlu0 %726, %v523
    %v728 = vpop.permute.xlu0 %727
    %731 = vset.pattern.permute.xlu0 0
    %732 = vperm.xlu0 %731, %v529
    %v733 = vpop.permute.xlu0 %732
    %736 = vset.pattern.permute.xlu0 0
    %737 = vperm.xlu0 %736, %v535
    %v738 = vpop.permute.xlu0 %737
    %741 = vset.pattern.permute.xlu0 0
    %742 = vperm.xlu0 %741, %v541
    %v743 = vpop.permute.xlu0 %742
    %746 = vset.pattern.permute.xlu0 0
    %747 = vperm.xlu0 %746, %v547
    %v748 = vpop.permute.xlu0 %747
    %751 = vset.pattern.permute.xlu0 0
    %752 = vperm.xlu0 %751, %v553
    %v753 = vpop.permute.xlu0 %752
    %756 = vset.pattern.permute.xlu0 0
    %757 = vperm.xlu0 %756, %v559
    %v758 = vpop.permute.xlu0 %757
    %761 = vset.pattern.permute.xlu0 0
    %762 = vperm.xlu0 %761, %v565
    %v763 = vpop.permute.xlu0 %762
    %766 = vset.pattern.permute.xlu0 0
    %767 = vperm.xlu0 %766, %v571
    %v768 = vpop.permute.xlu0 %767
    %771 = vset.pattern.permute.xlu0 0
    %772 = vperm.xlu0 %771, %v577
    %v773 = vpop.permute.xlu0 %772
    %776 = vset.pattern.permute.xlu0 0
    %777 = vperm.xlu0 %776, %v583
    %v778 = vpop.permute.xlu0 %777
    %781 = vset.pattern.permute.xlu0 0
    %782 = vperm.xlu0 %781, %v589
    %v783 = vpop.permute.xlu0 %782
    %786 = vset.pattern.permute.xlu0 0
    %787 = vperm.xlu0 %786, %v595
    %v788 = vpop.permute.xlu0 %787
    %v790 = vmul.f32 %v713, %v694
    %v791 = vmul.f32 %v718, %v695
    %v792 = vmul.f32 %v723, %v696
    %v793 = vmul.f32 %v728, %v697
    %v794 = vmul.f32 %v733, %v698
    %v795 = vmul.f32 %v738, %v699
    %v796 = vmul.f32 %v743, %v700
    %v797 = vmul.f32 %v748, %v701
    %v798 = vmul.f32 %v753, %v702
    %v799 = vmul.f32 %v758, %v703
    %v800 = vmul.f32 %v763, %v704
    %v801 = vmul.f32 %v768, %v705
    %v802 = vmul.f32 %v773, %v706
    %v803 = vmul.f32 %v778, %v707
    %v804 = vmul.f32 %v783, %v708
    %v805 = vmul.f32 %v788, %v709
    %s806 = scalar_lea.vmem %s4, %s40
    %v807 = vld [vmem:[%s806] sm:$0x1]
    %809 = vset.pattern.permute.xlu0 0
    %810 = vperm.xlu0 %809, %v601
    %v811 = vpop.permute.xlu0 %810
    %814 = vset.pattern.permute.xlu0 0
    %815 = vperm.xlu0 %814, %v607
    %v816 = vpop.permute.xlu0 %815
    %819 = vset.pattern.permute.xlu0 0
    %820 = vperm.xlu0 %819, %v613
    %v821 = vpop.permute.xlu0 %820
    %824 = vset.pattern.permute.xlu0 0
    %825 = vperm.xlu0 %824, %v619
    %v826 = vpop.permute.xlu0 %825
    %829 = vset.pattern.permute.xlu0 0
    %830 = vperm.xlu0 %829, %v625
    %v831 = vpop.permute.xlu0 %830
    %834 = vset.pattern.permute.xlu0 0
    %835 = vperm.xlu0 %834, %v631
    %v836 = vpop.permute.xlu0 %835
    %839 = vset.pattern.permute.xlu0 0
    %840 = vperm.xlu0 %839, %v637
    %v841 = vpop.permute.xlu0 %840
    %844 = vset.pattern.permute.xlu0 0
    %845 = vperm.xlu0 %844, %v643
    %v846 = vpop.permute.xlu0 %845
    %849 = vset.pattern.permute.xlu0 0
    %850 = vperm.xlu0 %849, %v649
    %v851 = vpop.permute.xlu0 %850
    %854 = vset.pattern.permute.xlu0 0
    %855 = vperm.xlu0 %854, %v655
    %v856 = vpop.permute.xlu0 %855
    %859 = vset.pattern.permute.xlu0 0
    %860 = vperm.xlu0 %859, %v661
    %v861 = vpop.permute.xlu0 %860
    %864 = vset.pattern.permute.xlu0 0
    %865 = vperm.xlu0 %864, %v667
    %v866 = vpop.permute.xlu0 %865
    %869 = vset.pattern.permute.xlu0 0
    %870 = vperm.xlu0 %869, %v673
    %v871 = vpop.permute.xlu0 %870
    %874 = vset.pattern.permute.xlu0 0
    %875 = vperm.xlu0 %874, %v679
    %v876 = vpop.permute.xlu0 %875
    %879 = vset.pattern.permute.xlu0 0
    %880 = vperm.xlu0 %879, %v685
    %v881 = vpop.permute.xlu0 %880
    %884 = vset.pattern.permute.xlu0 0
    %885 = vperm.xlu0 %884, %v691
    %v886 = vpop.permute.xlu0 %885
    %v888 = vmul.f32 %v811, %v790
    %v889 = vmul.f32 %v816, %v791
    %v890 = vmul.f32 %v821, %v792
    %v891 = vmul.f32 %v826, %v793
    %v892 = vmul.f32 %v831, %v794
    %v893 = vmul.f32 %v836, %v795
    %v894 = vmul.f32 %v841, %v796
    %v895 = vmul.f32 %v846, %v797
    %v896 = vmul.f32 %v851, %v798
    %v897 = vmul.f32 %v856, %v799
    %v898 = vmul.f32 %v861, %v800
    %v899 = vmul.f32 %v866, %v801
    %v900 = vmul.f32 %v871, %v802
    %v901 = vmul.f32 %v876, %v803
    %v902 = vmul.f32 %v881, %v804
    %v903 = vmul.f32 %v886, %v805
    %v904 = vadd.f32 %v888, %v889
    %v905 = vadd.f32 %v904, %v890
    %v906 = vadd.f32 %v905, %v891
    %v907 = vadd.f32 %v906, %v892
    %v908 = vadd.f32 %v907, %v893
    %v909 = vadd.f32 %v908, %v894
    %v910 = vadd.f32 %v909, %v895
    %v911 = vadd.f32 %v910, %v896
    %v912 = vadd.f32 %v911, %v897
    %v913 = vadd.f32 %v912, %v898
    %v914 = vadd.f32 %v913, %v899
    %v915 = vadd.f32 %v914, %v900
    %v916 = vadd.f32 %v915, %v901
    %v917 = vadd.f32 %v916, %v902
    %v918 = vadd.f32 %v917, %v903
    %v919 = vrot.slane %v918, 4
    %v920 = vadd.f32 %v918, %v919
    %v921 = vrot.slane %v920, 2
    %v922 = vadd.f32 %v920, %v921
    %v923 = vrot.slane %v922, 1
    %v924 = vadd.f32 %v922, %v923
    %v925 = vsub.f32 %v807, %v924
    %v926 = vpack.c.bf16 %v790, %v790
    %v927 = vpack.c.bf16 %v791, %v791
    %v928 = vpack.c.bf16 %v792, %v792
    %v929 = vpack.c.bf16 %v793, %v793
    %v930 = vpack.c.bf16 %v794, %v794
    %v931 = vpack.c.bf16 %v795, %v795
    %v932 = vpack.c.bf16 %v796, %v796
    %v933 = vpack.c.bf16 %v797, %v797
    %v934 = vpack.c.bf16 %v798, %v798
    %v935 = vpack.c.bf16 %v799, %v799
    %v936 = vpack.c.bf16 %v800, %v800
    %v937 = vpack.c.bf16 %v801, %v801
    %v938 = vpack.c.bf16 %v802, %v802
    %v939 = vpack.c.bf16 %v803, %v803
    %v940 = vpack.c.bf16 %v804, %v804
    %v941 = vpack.c.bf16 %v805, %v805
    %v942 = vpack.c.bf16 %v209, %v207
    %v943 = vpack.c.bf16 %v214, %v212
    %v944 = vpack.c.bf16 %v219, %v217
    %v945 = vpack.c.bf16 %v224, %v222
    %v946 = vpack.c.bf16 %v229, %v227
    %v947 = vpack.c.bf16 %v234, %v232
    %v948 = vpack.c.bf16 %v239, %v237
    %v949 = vpack.c.bf16 %v244, %v242
    %v950 = vpack.c.bf16 %v249, %v247
    %v951 = vpack.c.bf16 %v254, %v252
    %v952 = vpack.c.bf16 %v259, %v257
    %v953 = vpack.c.bf16 %v264, %v262
    %v954 = vpack.c.bf16 %v269, %v267
    %v955 = vpack.c.bf16 %v274, %v272
    %v956 = vpack.c.bf16 %v279, %v277
    %v957 = vpack.c.bf16 %v284, %v282
    %v966 = vunpack.c.l.b16 %v934
    %v967 = vunpack.c.l.b16 %v935
    %v968 = vunpack.c.l.b16 %v936
    %v969 = vunpack.c.l.b16 %v937
    %v970 = vunpack.c.l.b16 %v938
    %v971 = vunpack.c.l.b16 %v939
    %v972 = vunpack.c.l.b16 %v940
    %v973 = vunpack.c.l.b16 %v941
    %v974 = vpack.c.b16 %v967, %v966
    %v975 = vpack.c.b16 %v969, %v968
    %v976 = vpack.c.b16 %v971, %v970
    %v977 = vpack.c.b16 %v973, %v972
    %v983 = vsel %vm318, %v950, 0
    %v986 = vsel %vm318, %v951, 0
    %v989 = vsel %vm318, %v952, 0
    %v992 = vsel %vm318, %v953, 0
    %v995 = vsel %vm318, %v954, 0
    %v998 = vsel %vm318, %v955, 0
    %v1001 = vsel %vm318, %v956, 0
    %v1004 = vsel %vm318, %v957, 0
    %1006 = vmatpush.bf16.msra.mxu0 0
    %1007 = vmatpush.bf16.msra.mxu0 0
    %1008 = vmatpush.bf16.msra.mxu0 0
    %1009 = vmatpush.bf16.msra.mxu0 0
    %1010 = vmatpush.bf16.msra.mxu0 %v977
    %1011 = vmatpush.bf16.msra.mxu0 %v976
    %1012 = vmatpush.bf16.msra.mxu0 %v975
    %1013 = vmatpush.bf16.msra.mxu0 %v974
    %1014 = vmatmul.bf16.gmra.mxu0 %v983
    %v1015 = vpop.f32.mrf.mxu0
    %v1016 = vadd.f32 0.0, %v1015
    %v1017 = vpop.f32.mrf.mxu0
    %v1018 = vadd.f32 0.0, %v1017
    %1019 = vmatmul.bf16.gmra.mxu0 %v986
    %v1020 = vpop.f32.mrf.mxu0
    %v1021 = vadd.f32 0.0, %v1020
    %v1022 = vpop.f32.mrf.mxu0
    %v1023 = vadd.f32 0.0, %v1022
    %1024 = vmatmul.bf16.gmra.mxu0 %v989
    %v1025 = vpop.f32.mrf.mxu0
    %v1026 = vadd.f32 0.0, %v1025
    %v1027 = vpop.f32.mrf.mxu0
    %v1028 = vadd.f32 0.0, %v1027
    %1029 = vmatmul.bf16.gmra.mxu0 %v992
    %v1030 = vpop.f32.mrf.mxu0
    %v1031 = vadd.f32 0.0, %v1030
    %v1032 = vpop.f32.mrf.mxu0
    %v1033 = vadd.f32 0.0, %v1032
    %1034 = vmatmul.bf16.gmra.mxu0 %v995
    %v1035 = vpop.f32.mrf.mxu0
    %v1036 = vadd.f32 0.0, %v1035
    %v1037 = vpop.f32.mrf.mxu0
    %v1038 = vadd.f32 0.0, %v1037
    %1039 = vmatmul.bf16.gmra.mxu0 %v998
    %v1040 = vpop.f32.mrf.mxu0
    %v1041 = vadd.f32 0.0, %v1040
    %v1042 = vpop.f32.mrf.mxu0
    %v1043 = vadd.f32 0.0, %v1042
    %1044 = vmatmul.bf16.gmra.mxu0 %v1001
    %v1045 = vpop.f32.mrf.mxu0
    %v1046 = vadd.f32 0.0, %v1045
    %v1047 = vpop.f32.mrf.mxu0
    %v1048 = vadd.f32 0.0, %v1047
    %1049 = vmatmul.bf16.gmra.mxu0 %v1004
    %v1050 = vpop.f32.mrf.mxu0
    %v1051 = vadd.f32 0.0, %v1050
    %v1052 = vpop.f32.mrf.mxu0
    %v1053 = vadd.f32 0.0, %v1052
    %1054 = vdwg.mxu0
    %v1063 = vunpack.c.l.b16 %v926
    %v1064 = vunpack.c.l.b16 %v927
    %v1065 = vunpack.c.l.b16 %v928
    %v1066 = vunpack.c.l.b16 %v929
    %v1067 = vunpack.c.l.b16 %v930
    %v1068 = vunpack.c.l.b16 %v931
    %v1069 = vunpack.c.l.b16 %v932
    %v1070 = vunpack.c.l.b16 %v933
    %v1071 = vpack.c.b16 %v1064, %v1063
    %v1072 = vpack.c.b16 %v1066, %v1065
    %v1073 = vpack.c.b16 %v1068, %v1067
    %v1074 = vpack.c.b16 %v1070, %v1069
    %v1080 = vsel %vm318, %v942, 0
    %v1083 = vsel %vm318, %v943, 0
    %v1086 = vsel %vm318, %v944, 0
    %v1089 = vsel %vm318, %v945, 0
    %v1092 = vsel %vm318, %v946, 0
    %v1095 = vsel %vm318, %v947, 0
    %v1098 = vsel %vm318, %v948, 0
    %v1101 = vsel %vm318, %v949, 0
    %1103 = vmatpush.bf16.msra.mxu0 0
    %1104 = vmatpush.bf16.msra.mxu0 0
    %1105 = vmatpush.bf16.msra.mxu0 0
    %1106 = vmatpush.bf16.msra.mxu0 0
    %1107 = vmatpush.bf16.msra.mxu0 %v1074
    %1108 = vmatpush.bf16.msra.mxu0 %v1073
    %1109 = vmatpush.bf16.msra.mxu0 %v1072
    %1110 = vmatpush.bf16.msra.mxu0 %v1071
    %1111 = vmatmul.bf16.gmra.mxu0 %v1080
    %v1112 = vpop.f32.mrf.mxu0
    %v1113 = vadd.f32 %v1016, %v1112
    %v1114 = vpop.f32.mrf.mxu0
    %v1115 = vadd.f32 %v1018, %v1114
    %1116 = vmatmul.bf16.gmra.mxu0 %v1083
    %v1117 = vpop.f32.mrf.mxu0
    %v1118 = vadd.f32 %v1021, %v1117
    %v1119 = vpop.f32.mrf.mxu0
    %v1120 = vadd.f32 %v1023, %v1119
    %1121 = vmatmul.bf16.gmra.mxu0 %v1086
    %v1122 = vpop.f32.mrf.mxu0
    %v1123 = vadd.f32 %v1026, %v1122
    %v1124 = vpop.f32.mrf.mxu0
    %v1125 = vadd.f32 %v1028, %v1124
    %1126 = vmatmul.bf16.gmra.mxu0 %v1089
    %v1127 = vpop.f32.mrf.mxu0
    %v1128 = vadd.f32 %v1031, %v1127
    %v1129 = vpop.f32.mrf.mxu0
    %v1130 = vadd.f32 %v1033, %v1129
    %1131 = vmatmul.bf16.gmra.mxu0 %v1092
    %v1132 = vpop.f32.mrf.mxu0
    %v1133 = vadd.f32 %v1036, %v1132
    %v1134 = vpop.f32.mrf.mxu0
    %v1135 = vadd.f32 %v1038, %v1134
    %1136 = vmatmul.bf16.gmra.mxu0 %v1095
    %v1137 = vpop.f32.mrf.mxu0
    %v1138 = vadd.f32 %v1041, %v1137
    %v1139 = vpop.f32.mrf.mxu0
    %v1140 = vadd.f32 %v1043, %v1139
    %1141 = vmatmul.bf16.gmra.mxu0 %v1098
    %v1142 = vpop.f32.mrf.mxu0
    %v1143 = vadd.f32 %v1046, %v1142
    %v1144 = vpop.f32.mrf.mxu0
    %v1145 = vadd.f32 %v1048, %v1144
    %1146 = vmatmul.bf16.gmra.mxu0 %v1101
    %v1147 = vpop.f32.mrf.mxu0
    %v1148 = vadd.f32 %v1051, %v1147
    %v1149 = vpop.f32.mrf.mxu0
    %v1150 = vadd.f32 %v1053, %v1149
    %1151 = vdwg.mxu0
    %v1153 = vperm.slane %v925, 0
    %v1155 = vadd.f32 %v1113, %v1153
    %v1156 = vadd.f32 %v1115, %v1153
    %v1157 = vadd.f32 %v1118, %v1153
    %v1158 = vadd.f32 %v1120, %v1153
    %v1159 = vadd.f32 %v1123, %v1153
    %v1160 = vadd.f32 %v1125, %v1153
    %v1161 = vadd.f32 %v1128, %v1153
    %v1162 = vadd.f32 %v1130, %v1153
    %v1163 = vadd.f32 %v1133, %v1153
    %v1164 = vadd.f32 %v1135, %v1153
    %v1165 = vadd.f32 %v1138, %v1153
    %v1166 = vadd.f32 %v1140, %v1153
    %v1167 = vadd.f32 %v1143, %v1153
    %v1168 = vadd.f32 %v1145, %v1153
    %v1169 = vadd.f32 %v1148, %v1153
    %v1170 = vadd.f32 %v1150, %v1153
    %v1171 = vmax.f32 %v1155, 0.0
    %v1172 = vmax.f32 %v1156, 0.0
    %v1173 = vmax.f32 %v1157, 0.0
    %v1174 = vmax.f32 %v1158, 0.0
    %v1175 = vmax.f32 %v1159, 0.0
    %v1176 = vmax.f32 %v1160, 0.0
    %v1177 = vmax.f32 %v1161, 0.0
    %v1178 = vmax.f32 %v1162, 0.0
    %v1179 = vmax.f32 %v1163, 0.0
    %v1180 = vmax.f32 %v1164, 0.0
    %v1181 = vmax.f32 %v1165, 0.0
    %v1182 = vmax.f32 %v1166, 0.0
    %v1183 = vmax.f32 %v1167, 0.0
    %v1184 = vmax.f32 %v1168, 0.0
    %v1185 = vmax.f32 %v1169, 0.0
    %v1186 = vmax.f32 %v1170, 0.0
    %1203 = vrot.lane.b32.xlu0 %v1171, 64
    %v1204 = vpop.permute.xlu0 %1203
    %1205 = vrot.lane.b32.xlu0 %v1172, 64
    %v1206 = vpop.permute.xlu0 %1205
    %1207 = vrot.lane.b32.xlu0 %v1173, 64
    %v1208 = vpop.permute.xlu0 %1207
    %1209 = vrot.lane.b32.xlu0 %v1174, 64
    %v1210 = vpop.permute.xlu0 %1209
    %1211 = vrot.lane.b32.xlu0 %v1175, 64
    %v1212 = vpop.permute.xlu0 %1211
    %1213 = vrot.lane.b32.xlu0 %v1176, 64
    %v1214 = vpop.permute.xlu0 %1213
    %1215 = vrot.lane.b32.xlu0 %v1177, 64
    %v1216 = vpop.permute.xlu0 %1215
    %1217 = vrot.lane.b32.xlu0 %v1178, 64
    %v1218 = vpop.permute.xlu0 %1217
    %1219 = vrot.lane.b32.xlu0 %v1179, 64
    %v1220 = vpop.permute.xlu0 %1219
    %1221 = vrot.lane.b32.xlu0 %v1180, 64
    %v1222 = vpop.permute.xlu0 %1221
    %1223 = vrot.lane.b32.xlu0 %v1181, 64
    %v1224 = vpop.permute.xlu0 %1223
    %1225 = vrot.lane.b32.xlu0 %v1182, 64
    %v1226 = vpop.permute.xlu0 %1225
    %1227 = vrot.lane.b32.xlu0 %v1183, 64
    %v1228 = vpop.permute.xlu0 %1227
    %1229 = vrot.lane.b32.xlu0 %v1184, 64
    %v1230 = vpop.permute.xlu0 %1229
    %1231 = vrot.lane.b32.xlu0 %v1185, 64
    %v1232 = vpop.permute.xlu0 %1231
    %1233 = vrot.lane.b32.xlu0 %v1186, 64
    %v1234 = vpop.permute.xlu0 %1233
    %v1251 = vadd.f32 %v1171, %v1204
    %v1252 = vadd.f32 %v1172, %v1206
    %v1253 = vadd.f32 %v1173, %v1208
    %v1254 = vadd.f32 %v1174, %v1210
    %v1255 = vadd.f32 %v1175, %v1212
    %v1256 = vadd.f32 %v1176, %v1214
    %v1257 = vadd.f32 %v1177, %v1216
    %v1258 = vadd.f32 %v1178, %v1218
    %v1259 = vadd.f32 %v1179, %v1220
    %v1260 = vadd.f32 %v1180, %v1222
    %v1261 = vadd.f32 %v1181, %v1224
    %v1262 = vadd.f32 %v1182, %v1226
    %v1263 = vadd.f32 %v1183, %v1228
    %v1264 = vadd.f32 %v1184, %v1230
    %v1265 = vadd.f32 %v1185, %v1232
    %v1266 = vadd.f32 %v1186, %v1234
    %v1267 = vadd.f32 %v45, %v1251
    %v1268 = vadd.f32 %v46, %v1252
    %v1269 = vadd.f32 %v47, %v1253
    %v1270 = vadd.f32 %v48, %v1254
    %v1271 = vadd.f32 %v49, %v1255
    %v1272 = vadd.f32 %v50, %v1256
    %v1273 = vadd.f32 %v51, %v1257
    %v1274 = vadd.f32 %v52, %v1258
    %v1275 = vadd.f32 %v53, %v1259
    %v1276 = vadd.f32 %v54, %v1260
    %v1277 = vadd.f32 %v55, %v1261
    %v1278 = vadd.f32 %v56, %v1262
    %v1279 = vadd.f32 %v57, %v1263
    %v1280 = vadd.f32 %v58, %v1264
    %v1281 = vadd.f32 %v59, %v1265
    %v1282 = vadd.f32 %v60, %v1266
  $region26: #{model_forward.1} parent=0 // loop_footer
    %s44 = sadd.s32 1, %s40
  $region27: #{model_forward.1} parent=0 // loop_footer_branch
    %39 = sbr.rel target = $region23
  $region28: #{model_forward.1} parent=0 // loop_exit
    _
  %vm1283 = vcmask 523264
  %1284 = vst.msk [vmem:[%s5] sm:$0xff] %vm1283, %v45
  %1285 = vst.msk [vmem:[%s5 + $0x8] sm:$0xff] %vm1283, %v46
  %1286 = vst.msk [vmem:[%s5 + $0x10] sm:$0xff] %vm1283, %v47
  %1287 = vst.msk [vmem:[%s5 + $0x18] sm:$0xff] %vm1283, %v48
  %1288 = vst.msk [vmem:[%s5 + $0x20] sm:$0xff] %vm1283, %v49
  %1289 = vst.msk [vmem:[%s5 + $0x28] sm:$0xff] %vm1283, %v50
  %1290 = vst.msk [vmem:[%s5 + $0x30] sm:$0xff] %vm1283, %v51
  %1291 = vst.msk [vmem:[%s5 + $0x38] sm:$0xff] %vm1283, %v52
  %1292 = vst.msk [vmem:[%s5 + $0x40] sm:$0xff] %vm1283, %v53
  %1293 = vst.msk [vmem:[%s5 + $0x48] sm:$0xff] %vm1283, %v54
  %1294 = vst.msk [vmem:[%s5 + $0x50] sm:$0xff] %vm1283, %v55
  %1295 = vst.msk [vmem:[%s5 + $0x58] sm:$0xff] %vm1283, %v56
  %1296 = vst.msk [vmem:[%s5 + $0x60] sm:$0xff] %vm1283, %v57
  %1297 = vst.msk [vmem:[%s5 + $0x68] sm:$0xff] %vm1283, %v58
  %1298 = vst.msk [vmem:[%s5 + $0x70] sm:$0xff] %vm1283, %v59
  %1299 = vst.msk [vmem:[%s5 + $0x78] sm:$0xff] %vm1283, %v60
  // Predicated region
  $region29: #{model_forward.1} parent=0 // pred_check
    _
  $region30: #{model_forward.1} parent=0 // pred_check_branch
    %1301 = sbr.rel (0) target = $region32
  $region31: #{model_forward.1} parent=0 // pred_region
    _
  $region32: #{model_forward.1} parent=0 // pred_fallthru
    _
  // Predicated region
  $region33: #{model_forward.1} parent=0 // pred_check
    _
  $region34: #{model_forward.1} parent=0 // pred_check_branch
    %1303 = sbr.rel (0) target = $region36
  $region35: #{model_forward.1} parent=0 // pred_region
    _
  $region36: #{model_forward.1} parent=0 // pred_fallthru
    _

</llo_original>
